<compile_context>
chip_gen: v7x
topology: tpu7x:2x2x1
jax: 0.10.0
libtpu: 0.0.40
codegen_flags: <defaults>
</compile_context>

<pallas_src>
import functools
import math

import jax
import jax.numpy as jnp
from jax.experimental import pallas as pl
from jax.experimental.pallas import tpu as pltpu


_SUBLANE = 16  # legal sublane multiple for f32 (needs 8) and bf16 (needs 16)


# ---------------------------------------------------------------------------
# Kernel
# ---------------------------------------------------------------------------
def _layernorm_kernel(x_ref, gamma_ref, beta_ref, o_ref, *, eps, features):
    # x_ref:     (TR, F)  one tile of flattened (batch*seq, F) rows
    # gamma_ref: (1, F)   scale a_2 (already f32)
    # beta_ref:  (1, F)   bias  b_2 (already f32)
    x = x_ref[...].astype(jnp.float32)

    # mean over the feature axis
    mean = jnp.mean(x, axis=-1, keepdims=True)
    centered = x - mean

    # unbiased variance (divide by N-1), matching torch.Tensor.std default.
    # Two-pass form kept: numerically safe vs. the E[x^2]-E[x]^2 rewrite.
    var_unbiased = jnp.sum(centered * centered, axis=-1, keepdims=True) * (
        1.0 / (features - 1)
    )

    # eps added to std (not var), exactly as the PyTorch module does.
    # Per-row reciprocal on the EUP (one transcendental per row) instead of a
    # full [TR, F] element-wise divide. approx=False keeps 1e-5 tolerance.
    inv = pl.reciprocal(jnp.sqrt(var_unbiased) + eps, approx=False)  # (TR, 1)

    # [TR,1] broadcast multiply first, then the gamma FMA with f32 params.
    o_ref[...] = ((centered * inv) * gamma_ref[...] + beta_ref[...]).astype(
        o_ref.dtype
    )


# ---------------------------------------------------------------------------
# Per-chip tile / VMEM budgeting
# ---------------------------------------------------------------------------
def _vmem_capacity_bytes():
    try:
        return int(pltpu.get_tpu_info().vmem_capacity_bytes)
    except Exception:
        return 64 * 1024 * 1024  # conservative: v7x per-TensorCore VMEM


def _is_v7x():
    try:
        return "7" in jax.devices()[0].device_kind.lower()
    except Exception:
        return False


def _round_up(n, m):
    return ((n + m - 1) // m) * m


def _choose_tile_rows(rows, features, itemsize, vmem_cap):
    """Largest row tile that fits the per-chip VMEM block budget."""
    # ~1/4 of physical VMEM for block data: 32 MiB on v5e/v6e (128 MiB VMEM),
    # 16 MiB on v7x (64 MiB VMEM). No extra clamp — let big chips buy tiles.
    budget = vmem_cap // 4
    # Per-row VMEM cost: input + output blocks, each double-buffered, plus
    # roughly three f32 intermediates inside the kernel.
    bytes_per_row = features * (4 * itemsize + 3 * 4)
    tr = (budget // max(bytes_per_row, 1)) // _SUBLANE * _SUBLANE
    tr = max(_SUBLANE, min(tr, 1024))  # HBM utilization plateaus ~512-1024 rows
    # No point in a tile much larger than the row count itself.
    tr = min(tr, max(_SUBLANE, _round_up(rows, _SUBLANE)))
    # Keep only a few grid steps for pipelining / the core split: 2 suffices
    # on single-TensorCore chips (v5e/v6e: grid is a serial loop), 4 on v7x so
    # the two-TensorCore split stays balanced. (Previously forced 8 steps.)
    min_steps = 4 if _is_v7x() else 2
    while tr > _SUBLANE and (rows + tr - 1) // tr < min_steps:
        tr = max(_SUBLANE, (tr // 2) // _SUBLANE * _SUBLANE)
    return tr


def _vmem_limit_bytes(tr, features, itemsize, vmem_cap):
    """Tie the Mosaic VMEM limit to the chosen tile instead of hard-coding."""
    io_block = tr * features * itemsize
    need = 2 * 2 * io_block          # input + output blocks, double-buffered
    need += 3 * tr * features * 4    # f32 intermediates in the kernel
    need += 2 * 2 * features * 4     # gamma/beta blocks
    limit = need + (8 << 20)         # headroom for compiler scratch
    # Never request more than ~3/4 of physical VMEM (<= 48 MiB on v7x).
    return int(min(max(limit, 16 << 20), (vmem_cap * 3) // 4))


# ---------------------------------------------------------------------------
# Wrapper
# ---------------------------------------------------------------------------
def layer_norm(x, a_2, b_2, eps=1e-6, tile_rows=None):
    """LayerNorm over the last axis of x, using a Pallas TPU kernel.

    x:    [..., F]   (bf16 or f32; compute is f32 internally)
    a_2:  [F] scale
    b_2:  [F] bias
    """
    orig_shape = x.shape
    features = orig_shape[-1]
    assert features >= 2, "unbiased std (N-1) requires features >= 2"

    rows = math.prod(orig_shape[:-1])

    x2d = x.reshape(rows, features)
    # Cast gamma/beta to f32 once here (not per grid step inside the kernel);
    # the constant index_map keeps their blocks resident across grid steps.
    gamma2d = a_2.astype(jnp.float32).reshape(1, features)
    beta2d = b_2.astype(jnp.float32).reshape(1, features)

    itemsize = jnp.dtype(x.dtype).itemsize
    vmem_cap = _vmem_capacity_bytes()
    tr = (
        tile_rows
        if tile_rows is not None
        else _choose_tile_rows(rows, features, itemsize, vmem_cap)
    )

    # Ragged grid: no wrapper-side pad + slice round trip (each was a separate
    # XLA copy re-reading/re-writing the whole tensor in HBM). Pallas masks
    # the edge block's writeback; the tail block's garbage rows compute
    # harmless per-row values that are never stored or read back.
    grid = (pl.cdiv(rows, tr),)
    kernel = functools.partial(_layernorm_kernel, eps=eps, features=features)
    vmem_limit = _vmem_limit_bytes(tr, features, itemsize, vmem_cap)

    def run(dim_sem):
        return pl.pallas_call(
            kernel,
            out_shape=jax.ShapeDtypeStruct((rows, features), x.dtype),
            grid_spec=pltpu.PrefetchScalarGridSpec(
                num_scalar_prefetch=0,
                grid=grid,
                in_specs=[
                    # If a v7x profile shows exposed DMA at step boundaries,
                    # sweep pipeline_mode=pl.Buffered(3) on this spec.
                    pl.BlockSpec((tr, features), lambda i: (i, 0)),
                    pl.BlockSpec((1, features), lambda i: (0, 0)),
                    pl.BlockSpec((1, features), lambda i: (0, 0)),
                ],
                out_specs=pl.BlockSpec((tr, features), lambda i: (i, 0)),
            ),
            compiler_params=pltpu.CompilerParams(
                dimension_semantics=dim_sem,
                vmem_limit_bytes=vmem_limit,
            ),
        )(x2d, gamma2d, beta2d)

    # On v7x (2 TensorCores/chip) shard the memory-bound row loop across both
    # cores; fall back to plain "parallel" on 1-TC chips or if rejected.
    semantics_to_try = []
    if _is_v7x() and hasattr(pltpu, "CORE_PARALLEL"):
        semantics_to_try.append((pltpu.CORE_PARALLEL,))
    semantics_to_try.append(("parallel",))

    out2d = None
    last_err = None
    for dim_sem in semantics_to_try:
        try:
            out2d = jax.block_until_ready(run(dim_sem))
            break
        except Exception as e:  # fall back to the safe semantics
            last_err = e
            out2d = None
    if out2d is None:
        raise last_err

    return out2d.reshape(orig_shape)


def encoder_forward(x, a_2, b_2, eps=1e-6):
    """Encoder.forward: run each layer, then the final LayerNorm.

    # TODO(synk): Encoder.layers is a stack of N deep-copies of a generic
    # `layer` module whose definition is not part of this spec; only the
    # concrete final LayerNorm is lowered to a Pallas kernel here.
    """
    return layer_norm(x, a_2, b_2, eps=eps)


# ---------------------------------------------------------------------------
# Reference + smoke test
# ---------------------------------------------------------------------------
def _reference_layer_norm(x, a_2, b_2, eps=1e-6):
    """Pure-JAX reference matching the PyTorch module exactly."""
    x32 = x.astype(jnp.float32)
    mean = jnp.mean(x32, axis=-1, keepdims=True)
    var_unbiased = jnp.sum((x32 - mean) ** 2, axis=-1, keepdims=True) / (
        x.shape[-1] - 1
    )
    std = jnp.sqrt(var_unbiased)
    return (a_2 * (x32 - mean) / (std + eps) + b_2).astype(x.dtype)


if __name__ == "__main__":
    key = jax.random.PRNGKey(0)

    batch, seq, features = 2, 8, 32
    x = jax.random.normal(key, (batch, seq, features), dtype=jnp.float32)

    # Deterministic parameter init matching nn.Parameter(torch.ones/zeros).
    a_2 = jnp.ones((features,), dtype=jnp.float32)
    b_2 = jnp.zeros((features,), dtype=jnp.float32)

    out = encoder_forward(x, a_2, b_2, eps=1e-6)
    out = jax.block_until_ready(out)

    ref = _reference_layer_norm(x, a_2, b_2, eps=1e-6)
    assert out.shape == x.shape
    assert jnp.allclose(out, ref, atol=1e-5, rtol=1e-5), "mismatch vs reference"

    # Second check: row count not divisible by the tile (exercises the
    # ragged edge block / masked writeback path, no wrapper-side padding).
    key2 = jax.random.PRNGKey(1)
    x2 = jax.random.normal(key2, (3, 5, features), dtype=jnp.float32)
    out2 = jax.block_until_ready(encoder_forward(x2, a_2, b_2, eps=1e-6))
    ref2 = _reference_layer_norm(x2, a_2, b_2, eps=1e-6)
    assert out2.shape == x2.shape
    assert jnp.allclose(out2, ref2, atol=1e-5, rtol=1e-5), "ragged-path mismatch"

    print("KERNEL_OK")
</pallas_src>

<mosaic_0001>
module attributes {stable_mosaic.version = 11 : i64} {
  func.func @_layernorm_kernel(%arg0: i32, %arg1: memref<16x32xf32, #tpu.memory_space<vmem>>, %arg2: memref<1x32xf32, #tpu.memory_space<vmem>>, %arg3: memref<1x32xf32, #tpu.memory_space<vmem>>, %arg4: memref<16x32xf32, #tpu.memory_space<vmem>>) attributes {dimension_semantics = [#tpu.dimension_semantics<parallel>], iteration_bounds = array<i64: 1>, scalar_prefetch = 0 : i64, scratch_operands = 0 : i64, tpu.core_type = #tpu.core_type<tc>, window_params = [{transform_indices = @transform_0, window_bounds = array<i64: 16, 32>}, {pipeline_mode = #tpu.pipeline_mode<synchronous>, transform_indices = @transform_1, window_bounds = array<i64: 1, 32>}, {pipeline_mode = #tpu.pipeline_mode<synchronous>, transform_indices = @transform_2, window_bounds = array<i64: 1, 32>}, {transform_indices = @transform_3, window_bounds = array<i64: 16, 32>}]} {
    %c0 = arith.constant 0 : index
    %c0_0 = arith.constant 0 : index
    %0 = vector.load %arg1[%c0, %c0_0] : memref<16x32xf32, #tpu.memory_space<vmem>>, vector<16x32xf32>
    %cst = arith.constant dense<0.000000e+00> : vector<16xf32>
    %1 = vector.multi_reduction <add>, %0, %cst [1] : vector<16x32xf32> to vector<16xf32>
    %2 = vector.shape_cast %1 : vector<16xf32> to vector<16x1xf32>
    %cst_1 = arith.constant 3.200000e+01 : f32
    %3 = vector.broadcast %cst_1 : f32 to vector<16x1xf32>
    %4 = arith.divf %2, %3 : vector<16x1xf32>
    %5 = vector.broadcast %4 : vector<16x1xf32> to vector<16x32xf32>
    %6 = arith.subf %0, %5 : vector<16x32xf32>
    %7 = arith.mulf %6, %6 : vector<16x32xf32>
    %cst_2 = arith.constant dense<0.000000e+00> : vector<16xf32>
    %8 = vector.multi_reduction <add>, %7, %cst_2 [1] : vector<16x32xf32> to vector<16xf32>
    %9 = vector.shape_cast %8 : vector<16xf32> to vector<16x1xf32>
    %cst_3 = arith.constant 0.0322580636 : f32
    %10 = vector.broadcast %cst_3 : f32 to vector<16x1xf32>
    %11 = arith.mulf %9, %10 : vector<16x1xf32>
    %12 = math.sqrt %11 : vector<16x1xf32>
    %cst_4 = arith.constant 9.99999997E-7 : f32
    %13 = vector.broadcast %cst_4 : f32 to vector<16x1xf32>
    %14 = arith.addf %12, %13 : vector<16x1xf32>
    %15 = tpu.reciprocal %14 : vector<16x1xf32> -> vector<16x1xf32>
    %16 = vector.broadcast %15 : vector<16x1xf32> to vector<16x32xf32>
    %17 = arith.mulf %6, %16 : vector<16x32xf32>
    %c0_5 = arith.constant 0 : index
    %c0_6 = arith.constant 0 : index
    %18 = vector.load %arg2[%c0_5, %c0_6] : memref<1x32xf32, #tpu.memory_space<vmem>>, vector<1x32xf32>
    %19 = vector.broadcast %18 : vector<1x32xf32> to vector<16x32xf32>
    %20 = arith.mulf %17, %19 : vector<16x32xf32>
    %c0_7 = arith.constant 0 : index
    %c0_8 = arith.constant 0 : index
    %21 = vector.load %arg3[%c0_7, %c0_8] : memref<1x32xf32, #tpu.memory_space<vmem>>, vector<1x32xf32>
    %22 = vector.broadcast %21 : vector<1x32xf32> to vector<16x32xf32>
    %23 = arith.addf %20, %22 : vector<16x32xf32>
    %c0_9 = arith.constant 0 : index
    %c0_10 = arith.constant 0 : index
    %24 = vector.load %arg4[%c0_9, %c0_10] : memref<16x32xf32, #tpu.memory_space<vmem>>, vector<16x32xf32>
    tpu.vector_store %arg4[%c0_9, %c0_10], %23 {strides = array<i32>} : memref<16x32xf32, #tpu.memory_space<vmem>>, vector<16x32xf32>,
    return
  }
  func.func @transform_0(%arg0: i32) -> (i32, i32) {
    %c0_i32 = arith.constant 0 : i32
    %c0_i32_0 = arith.constant 0 : i32
    return %arg0, %c0_i32 : i32, i32
  }
  func.func @transform_1(%arg0: i32) -> (i32, i32) {
    %c0_i32 = arith.constant 0 : i32
    %c0_i32_0 = arith.constant 0 : i32
    %c0_i32_1 = arith.constant 0 : i32
    return %c0_i32, %c0_i32_0 : i32, i32
  }
  func.func @transform_2(%arg0: i32) -> (i32, i32) {
    %c0_i32 = arith.constant 0 : i32
    %c0_i32_0 = arith.constant 0 : i32
    %c0_i32_1 = arith.constant 0 : i32
    return %c0_i32, %c0_i32_0 : i32, i32
  }
  func.func @transform_3(%arg0: i32) -> (i32, i32) {
    %c0_i32 = arith.constant 0 : i32
    %c0_i32_0 = arith.constant 0 : i32
    return %arg0, %c0_i32 : i32, i32
  }
}

</mosaic_0001>

<llo_original>
// kernel: tpu_custom_call.1
$region0: #{tpu_custom_call.1}
  #allocation0 [shape = 'u32[]', space=smem, size = 0x4, offset = 0x4, fixed_abs, tag = 'smem constant byte address 0x4 - core index']
  #allocation1 [shape = 'u32[144,128]{1,0:T(1,128)}', space=vmem, size = 0x12000, scoped, tag = 'internal scratch']
  %s0 = inlined_call_operand.hbm [shape: f32[16,32], index: 0, kind: input, shape index: {}]
  %s1 = inlined_call_operand.vmem [shape: f32[1,32], index: 1, kind: input, shape index: {}]
  %s2 = inlined_call_operand.vmem [shape: f32[1,32], index: 2, kind: input, shape index: {}]
  %s3 = inlined_call_operand.hbm [shape: f32[16,32], index: 3, kind: output, shape index: {}]
  %s4 = sld [smem:[#allocation0]]
  $region26: #{tpu_custom_call.1} parent=0
    _
  %s6 = ssub.s32 1, %s4
  %s7 = scalar_select 0, %s6, %s4
  $region1: #{tpu_custom_call.1} parent=0
    #allocation2 [shape = 'u8[8192]{0}', space=vmem, size = 0x2000, scoped, tag = 'input window, operand 0, single buffered']
    #allocation3 [shape = 's32[1]{0}', space=sflag, size = 0x4, scoped, tag = 'scoped memory for tpu_custom_call.1']
    #allocation4 [shape = 's32[1]{0}', space=sflag, size = 0x4, scoped, tag = 'scoped memory for tpu_custom_call.1']
    #allocation5 [shape = 'u8[8192]{0}', space=vmem, size = 0x2000, scoped, tag = 'output window, operand 0, single buffered']
    %8 = vsyncpa [#allocation3], 0
    %9 = vsyncpa [#allocation4], 0
    // Predicated region
    $region2: #{tpu_custom_call.1} parent=1 // pred_check
      _
    $region3: #{tpu_custom_call.1} parent=1 // pred_check_branch
      %11 = sbr.rel (0) target = $region5
    $region4: #{tpu_custom_call.1} parent=1 // pred_region
      %s13 = ssub.s32 256, 256
      %14 = vsyncadd [#allocation3], %s13
      %s15 = sshll.u32 [#allocation2], 4
      %s16 = int_to_ptr.vmem [resolvable:$true] %s15
      %21 = dma.hbm_to_vmem [thread:$0]  %s0, 256, %s16, [#allocation3], 128, 128, 8
    $region5: #{tpu_custom_call.1} parent=1 // pred_fallthru
      _
    // Predicated region
    $region6: #{tpu_custom_call.1} parent=1 // pred_check
      _
    $region7: #{tpu_custom_call.1} parent=1 // pred_check_branch
      %23 = sbr.rel (0) target = $region9
    $region8: #{tpu_custom_call.1} parent=1 // pred_region
      _
    $region9: #{tpu_custom_call.1} parent=1 // pred_fallthru
      _
    // Predicated region
    $region10: #{tpu_custom_call.1} parent=1 // pred_check
      _
    $region11: #{tpu_custom_call.1} parent=1 // pred_check_branch
      %25 = sbr.rel (0) target = $region13
    $region12: #{tpu_custom_call.1} parent=1 // pred_region
      _
    $region13: #{tpu_custom_call.1} parent=1 // pred_fallthru
      _
    // Predicated region
    $region14: #{tpu_custom_call.1} parent=1 // pred_check
      _
    $region15: #{tpu_custom_call.1} parent=1 // pred_check_branch
      %27 = sbr.rel (0) target = $region17
    $region16: #{tpu_custom_call.1} parent=1 // pred_region
      %28 = dma.done [#allocation3], 256
    $region17: #{tpu_custom_call.1} parent=1 // pred_fallthru
      _
    %v29 = vld [vmem:[#allocation2] sm:$0xff]
    %v30 = vld [vmem:[#allocation2 + $0x8] sm:$0xff]
    %vm31 = vcmask 261120
    %v32 = vsel %vm31, %v29, 0.0
    %33 = vadd.xlane.f32.xlu0 %v32
    %v34 = vpop.xlane.xlu0 %33
    %v35 = vsel %vm31, %v30, 0.0
    %36 = vadd.xlane.f32.xlu0 %v35
    %v37 = vpop.xlane.xlu0 %36
    %v38 = vrcp.pop 32.0
    %v39 = vmul.f32 %v34, %v38
    %v40 = vmul.f32 %v37, %v38
    %v41 = vsub.f32 %v29, %v39
    %v42 = vsub.f32 %v30, %v40
    %v43 = vmul.f32 %v41, %v41
    %v44 = vmul.f32 %v42, %v42
    %v45 = vsel %vm31, %v43, 0.0
    %46 = vadd.xlane.f32.xlu0 %v45
    %v47 = vpop.xlane.xlu0 %46
    %v48 = vsel %vm31, %v44, 0.0
    %49 = vadd.xlane.f32.xlu0 %v48
    %v50 = vpop.xlane.xlu0 %49
    %v51 = vmul.f32 %v47, 0.032258064
    %v52 = vmul.f32 %v50, 0.032258064
    %v53 = vrsqrt.pop %v51
    %v54 = vmul.f32 %v51, %v53
    %vm55 = vcmp.eq.f32.partialorder %v51, inf
    %v56 = vsel %vm55, %v51, %v54
    %vm57 = vcmp.eq.f32.partialorder %v51, 0.0
    %v58 = vand.u32 %v51, 2147483648
    %v59 = vsel %vm57, %v58, %v56
    %v60 = vrsqrt.pop %v52
    %v61 = vmul.f32 %v52, %v60
    %vm62 = vcmp.eq.f32.partialorder %v52, inf
    %v63 = vsel %vm62, %v52, %v61
    %vm64 = vcmp.eq.f32.partialorder %v52, 0.0
    %v65 = vand.u32 %v52, 2147483648
    %v66 = vsel %vm64, %v65, %v63
    %v67 = vadd.f32 %v59, 1e-06
    %v68 = vadd.f32 %v66, 1e-06
    %v69 = vrcp.pop %v67
    %v70 = vrcp.pop %v68
    %v71 = vmul.f32 %v41, %v69
    %v72 = vmul.f32 %v42, %v70
    %v73 = vld [vmem:[%s1] sm:$0x1]
    %v75 = vlaneseq
    %v76 = vshrl.u32 %v75, 7
    %v77 = vsub.s32 0, %v76
    %v78 = vrot.slane %v73, %v77
    %v80 = vmul.f32 %v71, %v78
    %v81 = vmul.f32 %v72, %v78
    %v82 = vld [vmem:[%s2] sm:$0x1]
    %v84 = vlaneseq
    %v85 = vshrl.u32 %v84, 7
    %v86 = vsub.s32 0, %v85
    %v87 = vrot.slane %v82, %v86
    %v89 = vadd.f32 %v80, %v87
    %v90 = vadd.f32 %v81, %v87
    %91 = vst.msk [vmem:[#allocation5] sm:$0xff] %vm31, %v89
    %92 = vst.msk [vmem:[#allocation5 + $0x8] sm:$0xff] %vm31, %v90
    // Predicated region
    $region18: #{tpu_custom_call.1} parent=1 // pred_check
      _
    $region19: #{tpu_custom_call.1} parent=1 // pred_check_branch
      %94 = sbr.rel (0) target = $region21
    $region20: #{tpu_custom_call.1} parent=1 // pred_region
      %s96 = ssub.s32 256, 256
      %97 = vsyncadd [#allocation4], %s96
      %s98 = sshll.u32 [#allocation5], 4
      %s99 = int_to_ptr.vmem [resolvable:$true] %s98
      %104 = dma.vmem_to_hbm [thread:$0]  %s99, 256, %s3, [#allocation4], 128, 128, 8
    $region21: #{tpu_custom_call.1} parent=1 // pred_fallthru
      _
    // Predicated region
    $region22: #{tpu_custom_call.1} parent=1 // pred_check
      _
    $region23: #{tpu_custom_call.1} parent=1 // pred_check_branch
      %106 = sbr.rel (0) target = $region25
    $region24: #{tpu_custom_call.1} parent=1 // pred_region
      %107 = dma.done [#allocation4], 256
    $region25: #{tpu_custom_call.1} parent=1 // pred_fallthru
      _
    %108 = vsyncpa [#allocation3], 1
    %109 = vsyncpa [#allocation4], 1

</llo_original>
